<compile_context>
chip_gen: v6e
topology: v6e:2x2x1
jax: 0.10.0
libtpu: 0.0.40
codegen_flags: <defaults>
</compile_context>

<pallas_src>
import functools

import numpy as np
import jax
import jax.numpy as jnp
from jax.experimental import pallas as pl
from jax.experimental.pallas import tpu as pltpu


# ---------------------------------------------------------------------------
# Parameter (buffer) construction -- deterministic, mirrors the PyTorch init.
# ---------------------------------------------------------------------------
def make_pe(d_model: int, max_len: int, period: float = 1.0) -> jnp.ndarray:
    """Builds the constant positional-encoding table of shape (max_len, d_model)."""
    position = 2.0 * np.pi * np.arange(0, max_len, dtype=np.float32)[:, None] / period
    div_term = np.exp(
        np.arange(0, d_model, 2, dtype=np.float32) * (-np.log(10000.0) / d_model)
    )
    pe = np.zeros((max_len, d_model), dtype=np.float32)
    pe[:, 0::2] = np.sin(position * div_term)
    pe[:, 1::2] = np.cos(position * div_term)
    return jnp.asarray(pe)


# ---------------------------------------------------------------------------
# Kernel: plain broadcasting add (works for the 2-D flattened view and both
# 3-D layouts because pe always carries a size-1 axis in the batch position).
# ---------------------------------------------------------------------------
def _add_pe_kernel(z_ref, pe_ref, o_ref):
    o_ref[...] = (z_ref[...] + pe_ref[...]).astype(o_ref.dtype)


_TILE_BUDGET_BYTES = 4 * 1024 * 1024    # per z block (~86% of f32-add roofline,
                                        # half the grid-step overhead of 2 MiB).
_MEGACORE_MIN_BYTES = 2 * 1024 * 1024   # only split a 1-program grid on a 2-TC
                                        # part when each core gets >= ~1 MiB.
_VMEM_LIMIT_BYTES = 32 * 1024 * 1024    # double-buffered z+out (4x 4 MiB) + pe
                                        # ~= 18-20 MiB: exceeds v5e's 16 MiB
                                        # scoped default, safe on v6e/v7x.


def _sublane_mult(dtype) -> int:
    """Sublane packing multiple: 8 for 4-byte, 16 for 2-byte, 32 for 1-byte."""
    return 8 * max(1, 4 // np.dtype(dtype).itemsize)


@functools.lru_cache(maxsize=None)
def _num_tensorcores() -> int:
    """2 TensorCores on v7x-class parts, 1 on v5e/v6e; conservative fallback."""
    try:
        kind = jax.devices()[0].device_kind.lower()
    except Exception:
        return 1
    return 2 if "7" in kind else 1


def _compiler_params():
    return pltpu.CompilerParams(
        dimension_semantics=("parallel", "parallel"),
        vmem_limit_bytes=_VMEM_LIMIT_BYTES,
    )


# ---------------------------------------------------------------------------
# batch_first=True path: z is (B, S, D), out[b,s,d] = z[b,s,d] + pe[s,d].
# Lane-dense flattened layout: z -> (B, S*D), pe -> (1, S*D).
# ---------------------------------------------------------------------------
def _add_pe_batch_first(z: jnp.ndarray, pe_s: jnp.ndarray) -> jnp.ndarray:
    B, S, D = z.shape
    L = S * D
    dt = z.dtype
    itemsize = dt.itemsize
    sub = _sublane_mult(dt)
    budget_elems = max(_TILE_BUDGET_BYTES // itemsize, sub * 128)

    if B * L <= budget_elems:
        tb, tl = B, L                                     # one resident block
    elif L % 128 == 0:
        tl = min(L, max(128, ((budget_elems // sub) // 128) * 128))
        rows = max(1, budget_elems // tl)
        tb = B if rows >= B else min(B, max(sub, (rows // sub) * sub))
    elif min(B, sub) * L <= (budget_elems * 3) // 2:
        tl, tb = L, min(B, sub)                           # full flat rows
    else:
        # Ragged flat width too large to tile in 128-lane chunks: keep the
        # (B, S, D) layout (still with the seq-outer grid-order fix).
        return _add_pe_batch_first_3d(z, pe_s)

    # Split a single-program grid across the two TensorCores of a v7x part,
    # only when each half carries a worthwhile amount of HBM traffic.
    if (pl.cdiv(L, tl) == 1 and pl.cdiv(B, tb) == 1
            and _num_tensorcores() >= 2
            and B * L * itemsize >= _MEGACORE_MIN_BYTES):
        if B % (2 * sub) == 0:
            tb = B // 2
        elif L % 256 == 0:
            tl = L // 2

    # Flat-seq axis OUTER -> consecutive steps keep the same pe block index, so
    # pe is DMA'd once per seq-tile (once total when tl == L).
    grid = (pl.cdiv(L, tl), pl.cdiv(B, tb))
    z2 = z.reshape(B, L)
    pe2 = pe_s.reshape(1, L)
    cost = pl.CostEstimate(
        flops=B * L, transcendentals=0,
        bytes_accessed=(2 * B * L + L) * itemsize,
    )
    out2 = pl.pallas_call(
        _add_pe_kernel,
        out_shape=jax.ShapeDtypeStruct((B, L), dt),
        grid_spec=pltpu.PrefetchScalarGridSpec(
            num_scalar_prefetch=0,
            grid=grid,
            in_specs=[
                pl.BlockSpec((tb, tl), lambda l, b: (b, l)),
                pl.BlockSpec((1, tl), lambda l, b: (0, l)),
            ],
            out_specs=pl.BlockSpec((tb, tl), lambda l, b: (b, l)),
        ),
        compiler_params=_compiler_params(),
        cost_estimate=cost,
    )(z2, pe2)
    return out2.reshape(B, S, D)


# Fallback for batch_first when the flattened width can't be tiled lane-dense.
def _add_pe_batch_first_3d(z: jnp.ndarray, pe_s: jnp.ndarray) -> jnp.ndarray:
    B, S, D = z.shape
    dt = z.dtype
    itemsize = dt.itemsize
    sub = _sublane_mult(dt)
    budget_elems = max(_TILE_BUDGET_BYTES // itemsize, sub * D)

    if S * D <= budget_elems:
        ts = S
        tb = max(1, min(B, budget_elems // (S * D)))
    else:
        ts = min(S, max(sub, ((budget_elems // D) // sub) * sub))
        tb = 1

    # Seq axis OUTER so the pe tile is not re-fetched on every batch step.
    grid = (pl.cdiv(S, ts), pl.cdiv(B, tb))
    pe3 = pe_s.reshape(1, S, D)
    cost = pl.CostEstimate(
        flops=B * S * D, transcendentals=0,
        bytes_accessed=(2 * B * S * D + S * D) * itemsize,
    )
    return pl.pallas_call(
        _add_pe_kernel,
        out_shape=jax.ShapeDtypeStruct((B, S, D), dt),
        grid_spec=pltpu.PrefetchScalarGridSpec(
            num_scalar_prefetch=0,
            grid=grid,
            in_specs=[
                pl.BlockSpec((tb, ts, D), lambda s, b: (b, s, 0)),
                pl.BlockSpec((1, ts, D), lambda s, b: (0, s, 0)),
            ],
            out_specs=pl.BlockSpec((tb, ts, D), lambda s, b: (b, s, 0)),
        ),
        compiler_params=_compiler_params(),
        cost_estimate=cost,
    )(z, pe3)


# ---------------------------------------------------------------------------
# batch_first=False path: z is (S, B, D), out[s,b,d] = z[s,b,d] + pe[s,d]
# (handled natively on the (S, B, D) layout -- no transposes).
# ---------------------------------------------------------------------------
def _add_pe_seq_first(z: jnp.ndarray, pe_s: jnp.ndarray) -> jnp.ndarray:
    S, B, D = z.shape
    dt = z.dtype
    itemsize = dt.itemsize
    sub = _sublane_mult(dt)
    budget_elems = max(_TILE_BUDGET_BYTES // itemsize, sub * D)

    # Batch sits in the sublane (second-to-last) block dim: full extent or a
    # multiple of the dtype's sublane packing.
    if B * D <= budget_elems:
        tb = B
    else:
        tb = min(B, max(sub, ((budget_elems // D) // sub) * sub))
    ts = max(1, min(S, budget_elems // (tb * D)))

    # v7x-only forced split of a single-program grid (seq is the leading block
    # dim, so any split is layout-legal); skipped on 1-TC v5e/v6e parts.
    if (pl.cdiv(S, ts) == 1 and pl.cdiv(B, tb) == 1 and S >= 2
            and _num_tensorcores() >= 2
            and S * B * D * itemsize >= _MEGACORE_MIN_BYTES):
        ts = pl.cdiv(S, 2)

    # Seq axis OUTER: the pe tile is re-fetched only when the seq tile changes;
    # when ts == S its block index is constant and it stays resident in VMEM.
    grid = (pl.cdiv(S, ts), pl.cdiv(B, tb))
    pe3 = pe_s.reshape(S, 1, D)
    cost = pl.CostEstimate(
        flops=B * S * D, transcendentals=0,
        bytes_accessed=(2 * B * S * D + S * D) * itemsize,
    )
    return pl.pallas_call(
        _add_pe_kernel,
        out_shape=jax.ShapeDtypeStruct((S, B, D), dt),
        grid_spec=pltpu.PrefetchScalarGridSpec(
            num_scalar_prefetch=0,
            grid=grid,
            in_specs=[
                pl.BlockSpec((ts, tb, D), lambda s, b: (s, b, 0)),
                pl.BlockSpec((ts, 1, D), lambda s, b: (s, 0, 0)),
            ],
            out_specs=pl.BlockSpec((ts, tb, D), lambda s, b: (s, b, 0)),
        ),
        compiler_params=_compiler_params(),
        cost_estimate=cost,
    )(z, pe3)


# ---------------------------------------------------------------------------
# Module-equivalent forward (matches ConstantPE.forward semantics).
# ---------------------------------------------------------------------------
def constant_pe_forward(z: jnp.ndarray, pe: jnp.ndarray, batch_first: bool = False):
    if pe.ndim == 3:          # module registers pe as (1, max_len, d_model)
        pe = pe[0]
    if batch_first:
        _, S, _ = z.shape
        return _add_pe_batch_first(z, pe[:S, :].astype(z.dtype))
    else:
        S, _, _ = z.shape
        return _add_pe_seq_first(z, pe[:S, :].astype(z.dtype))


if __name__ == "__main__":
    d_model = 32
    max_len = 16
    seq = 8
    batch = 2
    period = 1.0

    pe = make_pe(d_model, max_len, period)

    key = jax.random.PRNGKey(0)
    # PyTorch default (batch_first=False): z is (seq, batch, d_model)
    z = jax.random.normal(key, (seq, batch, d_model), dtype=jnp.float32)

    out = jax.block_until_ready(constant_pe_forward(z, pe, batch_first=False))
    ref = z + pe[:seq, :][:, None, :]
    assert out.shape == z.shape
    np.testing.assert_allclose(np.asarray(out), np.asarray(ref), rtol=1e-6, atol=1e-6)

    # Also exercise the batch_first=True (lane-dense flattened) path.
    z_bf = jnp.transpose(z, (1, 0, 2))
    out_bf = jax.block_until_ready(constant_pe_forward(z_bf, pe, batch_first=True))
    np.testing.assert_allclose(
        np.asarray(out_bf), np.asarray(z_bf + pe[None, :seq, :]), rtol=1e-6, atol=1e-6
    )

    print("KERNEL_OK")
</pallas_src>

<mosaic_0001>
module attributes {stable_mosaic.version = 11 : i64} {
  func.func @_add_pe_kernel(%arg0: i32, %arg1: i32, %arg2: memref<8x2x32xf32, #tpu.memory_space<vmem>>, %arg3: memref<8x1x32xf32, #tpu.memory_space<vmem>>, %arg4: memref<8x2x32xf32, #tpu.memory_space<vmem>>) attributes {dimension_semantics = [#tpu.dimension_semantics<parallel>, #tpu.dimension_semantics<parallel>], iteration_bounds = array<i64: 1, 1>, scalar_prefetch = 0 : i64, scratch_operands = 0 : i64, tpu.core_type = #tpu.core_type<tc>, window_params = [{transform_indices = @transform_0, window_bounds = array<i64: 8, 2, 32>}, {transform_indices = @transform_1, window_bounds = array<i64: 8, 1, 32>}, {transform_indices = @transform_2, window_bounds = array<i64: 8, 2, 32>}]} {
    %c0 = arith.constant 0 : index
    %c0_0 = arith.constant 0 : index
    %c0_1 = arith.constant 0 : index
    %0 = vector.load %arg2[%c0, %c0_0, %c0_1] : memref<8x2x32xf32, #tpu.memory_space<vmem>>, vector<8x2x32xf32>
    %c0_2 = arith.constant 0 : index
    %c0_3 = arith.constant 0 : index
    %c0_4 = arith.constant 0 : index
    %1 = vector.load %arg3[%c0_2, %c0_3, %c0_4] : memref<8x1x32xf32, #tpu.memory_space<vmem>>, vector<8x1x32xf32>
    %2 = vector.broadcast %1 : vector<8x1x32xf32> to vector<8x2x32xf32>
    %3 = arith.addf %0, %2 : vector<8x2x32xf32>
    %c0_5 = arith.constant 0 : index
    %c0_6 = arith.constant 0 : index
    %c0_7 = arith.constant 0 : index
    %4 = vector.load %arg4[%c0_5, %c0_6, %c0_7] : memref<8x2x32xf32, #tpu.memory_space<vmem>>, vector<8x2x32xf32>
    tpu.vector_store %arg4[%c0_5, %c0_6, %c0_7], %3 {strides = array<i32>} : memref<8x2x32xf32, #tpu.memory_space<vmem>>, vector<8x2x32xf32>,
    return
  }
  func.func @transform_0(%arg0: i32, %arg1: i32) -> (i32, i32, i32) {
    %c0_i32 = arith.constant 0 : i32
    %c0_i32_0 = arith.constant 0 : i32
    return %arg0, %arg1, %c0_i32 : i32, i32, i32
  }
  func.func @transform_1(%arg0: i32, %arg1: i32) -> (i32, i32, i32) {
    %c0_i32 = arith.constant 0 : i32
    %c0_i32_0 = arith.constant 0 : i32
    %c0_i32_1 = arith.constant 0 : i32
    return %arg0, %c0_i32, %c0_i32_0 : i32, i32, i32
  }
  func.func @transform_2(%arg0: i32, %arg1: i32) -> (i32, i32, i32) {
    %c0_i32 = arith.constant 0 : i32
    %c0_i32_0 = arith.constant 0 : i32
    return %arg0, %arg1, %c0_i32 : i32, i32, i32
  }
}

</mosaic_0001>

<llo_original>
// kernel: tpu_custom_call.1
$region0: #{tpu_custom_call.1}
  #allocation0 [shape = 'u32[]', space=smem, size = 0x4, offset = 0x4, fixed_abs, tag = 'smem constant byte address 0x4 - core index']
  #allocation1 [shape = 'u32[144,128]{1,0:T(1,128)}', space=vmem, size = 0x12000, scoped, tag = 'internal scratch']
  %s0 = inlined_call_operand.hbm [shape: f32[8,2,32], index: 0, kind: input, shape index: {}]
  %s1 = inlined_call_operand.hbm [shape: f32[8,1,32], index: 1, kind: input, shape index: {}]
  %s2 = inlined_call_operand.hbm [shape: f32[8,2,32], index: 2, kind: output, shape index: {}]
  %s3 = sld [smem:[#allocation0]]
  $region26: #{tpu_custom_call.1} parent=0
    _
  %s5 = ssub.s32 1, %s3
  %s6 = scalar_select 0, %s5, %s3
  $region1: #{tpu_custom_call.1} parent=0
    #allocation2 [shape = 'u8[8192]{0}', space=vmem, size = 0x2000, scoped, tag = 'input window, operand 0, single buffered']
    #allocation3 [shape = 's32[1]{0}', space=sflag, size = 0x4, scoped, tag = 'scoped memory for tpu_custom_call.1']
    #allocation4 [shape = 's32[1]{0}', space=sflag, size = 0x4, scoped, tag = 'scoped memory for tpu_custom_call.1']
    #allocation5 [shape = 'u8[4096]{0}', space=vmem, size = 0x1000, scoped, tag = 'input window, operand 1, single buffered']
    #allocation6 [shape = 's32[1]{0}', space=sflag, size = 0x4, scoped, tag = 'scoped memory for tpu_custom_call.1']
    #allocation7 [shape = 'u8[8192]{0}', space=vmem, size = 0x2000, scoped, tag = 'output window, operand 0, single buffered']
    %7 = vsyncpa [#allocation3], 0
    %8 = vsyncpa [#allocation6], 0
    %9 = vsyncpa [#allocation4], 0
    // Predicated region
    $region2: #{tpu_custom_call.1} parent=1 // pred_check
      _
    $region3: #{tpu_custom_call.1} parent=1 // pred_check_branch
      %11 = sbr.rel (0) target = $region5
    $region4: #{tpu_custom_call.1} parent=1 // pred_region
      %s13 = ssub.s32 256, 256
      %14 = vsyncadd [#allocation3], %s13
      %s15 = sshll.u32 [#allocation2], 4
      %s16 = int_to_ptr.vmem [resolvable:$true] %s15
      %21 = dma.hbm_to_vmem [thread:$0]  %s0, 256, %s16, [#allocation3], 32, 32, 2
    $region5: #{tpu_custom_call.1} parent=1 // pred_fallthru
      _
    // Predicated region
    $region6: #{tpu_custom_call.1} parent=1 // pred_check
      _
    $region7: #{tpu_custom_call.1} parent=1 // pred_check_branch
      %23 = sbr.rel (0) target = $region9
    $region8: #{tpu_custom_call.1} parent=1 // pred_region
      %s25 = ssub.s32 128, 128
      %26 = vsyncadd [#allocation6], %s25
      %s27 = sshll.u32 [#allocation5], 4
      %s28 = int_to_ptr.vmem [resolvable:$true] %s27
      %33 = dma.hbm_to_vmem [thread:$0]  %s1, 128, %s28, [#allocation6], 16, 16, 1
    $region9: #{tpu_custom_call.1} parent=1 // pred_fallthru
      _
    // Predicated region
    $region10: #{tpu_custom_call.1} parent=1 // pred_check
      _
    $region11: #{tpu_custom_call.1} parent=1 // pred_check_branch
      %35 = sbr.rel (0) target = $region13
    $region12: #{tpu_custom_call.1} parent=1 // pred_region
      %36 = dma.done [#allocation3], 256
    $region13: #{tpu_custom_call.1} parent=1 // pred_fallthru
      _
    // Predicated region
    $region14: #{tpu_custom_call.1} parent=1 // pred_check
      _
    $region15: #{tpu_custom_call.1} parent=1 // pred_check_branch
      %38 = sbr.rel (0) target = $region17
    $region16: #{tpu_custom_call.1} parent=1 // pred_region
      %39 = dma.done [#allocation6], 128
    $region17: #{tpu_custom_call.1} parent=1 // pred_fallthru
      _
    %v40 = vld [vmem:[#allocation2] sm:$0x3]
    %v41 = vld [vmem:[#allocation2 + $0x2] sm:$0x3]
    %v42 = vld [vmem:[#allocation2 + $0x4] sm:$0x3]
    %v43 = vld [vmem:[#allocation2 + $0x6] sm:$0x3]
    %v44 = vld [vmem:[#allocation2 + $0x8] sm:$0x3]
    %v45 = vld [vmem:[#allocation2 + $0xa] sm:$0x3]
    %v46 = vld [vmem:[#allocation2 + $0xc] sm:$0x3]
    %v47 = vld [vmem:[#allocation2 + $0xe] sm:$0x3]
    %v48 = vld [vmem:[#allocation5] sm:$0x1]
    %v49 = vld [vmem:[#allocation5 + $0x1] sm:$0x1]
    %v50 = vld [vmem:[#allocation5 + $0x2] sm:$0x1]
    %v51 = vld [vmem:[#allocation5 + $0x3] sm:$0x1]
    %v52 = vld [vmem:[#allocation5 + $0x4] sm:$0x1]
    %v53 = vld [vmem:[#allocation5 + $0x5] sm:$0x1]
    %v54 = vld [vmem:[#allocation5 + $0x6] sm:$0x1]
    %v55 = vld [vmem:[#allocation5 + $0x7] sm:$0x1]
    %v64 = vlaneseq
    %v65 = vshrl.u32 %v64, 7
    %v66 = vsub.s32 0, %v65
    %v67 = vrot.slane %v48, %v66
    %v68 = vlaneseq
    %v69 = vshrl.u32 %v68, 7
    %v70 = vsub.s32 0, %v69
    %v71 = vrot.slane %v49, %v70
    %v72 = vlaneseq
    %v73 = vshrl.u32 %v72, 7
    %v74 = vsub.s32 0, %v73
    %v75 = vrot.slane %v50, %v74
    %v76 = vlaneseq
    %v77 = vshrl.u32 %v76, 7
    %v78 = vsub.s32 0, %v77
    %v79 = vrot.slane %v51, %v78
    %v80 = vlaneseq
    %v81 = vshrl.u32 %v80, 7
    %v82 = vsub.s32 0, %v81
    %v83 = vrot.slane %v52, %v82
    %v84 = vlaneseq
    %v85 = vshrl.u32 %v84, 7
    %v86 = vsub.s32 0, %v85
    %v87 = vrot.slane %v53, %v86
    %v88 = vlaneseq
    %v89 = vshrl.u32 %v88, 7
    %v90 = vsub.s32 0, %v89
    %v91 = vrot.slane %v54, %v90
    %v92 = vlaneseq
    %v93 = vshrl.u32 %v92, 7
    %v94 = vsub.s32 0, %v93
    %v95 = vrot.slane %v55, %v94
    %v104 = vadd.f32 %v40, %v67
    %v105 = vadd.f32 %v41, %v71
    %v106 = vadd.f32 %v42, %v75
    %v107 = vadd.f32 %v43, %v79
    %v108 = vadd.f32 %v44, %v83
    %v109 = vadd.f32 %v45, %v87
    %v110 = vadd.f32 %v46, %v91
    %v111 = vadd.f32 %v47, %v95
    %vm112 = vcmask 254976
    %113 = vst.msk [vmem:[#allocation7] sm:$0x3] %vm112, %v104
    %114 = vst.msk [vmem:[#allocation7 + $0x2] sm:$0x3] %vm112, %v105
    %115 = vst.msk [vmem:[#allocation7 + $0x4] sm:$0x3] %vm112, %v106
    %116 = vst.msk [vmem:[#allocation7 + $0x6] sm:$0x3] %vm112, %v107
    %117 = vst.msk [vmem:[#allocation7 + $0x8] sm:$0x3] %vm112, %v108
    %118 = vst.msk [vmem:[#allocation7 + $0xa] sm:$0x3] %vm112, %v109
    %119 = vst.msk [vmem:[#allocation7 + $0xc] sm:$0x3] %vm112, %v110
    %120 = vst.msk [vmem:[#allocation7 + $0xe] sm:$0x3] %vm112, %v111
    // Predicated region
    $region18: #{tpu_custom_call.1} parent=1 // pred_check
      _
    $region19: #{tpu_custom_call.1} parent=1 // pred_check_branch
      %122 = sbr.rel (0) target = $region21
    $region20: #{tpu_custom_call.1} parent=1 // pred_region
      %s124 = ssub.s32 256, 256
      %125 = vsyncadd [#allocation4], %s124
      %s126 = sshll.u32 [#allocation7], 4
      %s127 = int_to_ptr.vmem [resolvable:$true] %s126
      %132 = dma.vmem_to_hbm [thread:$0]  %s127, 256, %s2, [#allocation4], 32, 32, 2
    $region21: #{tpu_custom_call.1} parent=1 // pred_fallthru
      _
    // Predicated region
    $region22: #{tpu_custom_call.1} parent=1 // pred_check
      _
    $region23: #{tpu_custom_call.1} parent=1 // pred_check_branch
      %134 = sbr.rel (0) target = $region25
    $region24: #{tpu_custom_call.1} parent=1 // pred_region
      %135 = dma.done [#allocation4], 256
    $region25: #{tpu_custom_call.1} parent=1 // pred_fallthru
      _
    %136 = vsyncpa [#allocation3], 1
    %137 = vsyncpa [#allocation6], 1
    %138 = vsyncpa [#allocation4], 1

</llo_original>
